<compile_context>
chip_gen: v7x
topology: tpu7x:2x2x1
jax: 0.10.0
libtpu: 0.0.40
codegen_flags: <defaults>
</compile_context>

<pallas_src>
import math

import jax
import jax.numpy as jnp
from jax.experimental import pallas as pl
from jax.experimental.pallas import tpu as pltpu


def _mlp_kernel(xt_ref, w1t_ref, b1_ref, w2t_ref, b2_ref, ot_ref):
    # Shapes (all resident in VMEM, single block):
    #   xt_ref : (F, Npad)   input, batch on lanes
    #   w1t_ref: (H, F)      hidden-layer weight, transposed
    #   b1_ref : (H, 1)      hidden-layer bias (column)
    #   w2t_ref: (O, H)      output-layer weight, transposed
    #   b2_ref : (O, 1)      output-layer bias (column)
    #   ot_ref : (O, Npad)   output, batch on lanes
    n_f = xt_ref.shape[0]
    n_h = w1t_ref.shape[0]

    # Layer 1: h = relu(W1^T @ x^T + b1), as F unrolled VPU broadcast-FMAs,
    # accumulator initialized with the bias (no separate bias-add pass).
    h = b1_ref[...] + w1t_ref[:, 0:1] * xt_ref[0:1, :]          # (H, Npad)
    for f in range(1, n_f):
        h = h + w1t_ref[:, f:f + 1] * xt_ref[f:f + 1, :]
    h = jnp.maximum(h, 0.0)                                      # F.relu, f32

    # Layer 2: out = W2^T @ h + b2, as H unrolled VPU broadcast-FMAs.
    out = b2_ref[...] + w2t_ref[:, 0:1] * h[0:1, :]              # (O, Npad)
    for j in range(1, n_h):
        out = out + w2t_ref[:, j:j + 1] * h[j:j + 1, :]

    ot_ref[...] = out.astype(ot_ref.dtype)


def net_forward(x, w1, b1, w2, b2):
    """x: (N, F) float32; w1: (F, H); b1: (H,); w2: (H, O); b2: (O,). Returns (N, O)."""
    n, f = x.shape
    h = w1.shape[1]
    o = w2.shape[1]

    # Pad batch up to a multiple of 128 and put it on the lane axis.
    n_pad = ((n + 127) // 128) * 128
    xt = jnp.zeros((f, n_pad), x.dtype).at[:, :n].set(x.T)       # (F, Npad)
    w1t = w1.T                                                   # (H, F)
    w2t = w2.T                                                   # (O, H)
    b1c = b1.reshape(h, 1)                                       # (H, 1)
    b2c = b2.reshape(o, 1)                                       # (O, 1)

    out_t = pl.pallas_call(
        _mlp_kernel,
        out_shape=jax.ShapeDtypeStruct((o, n_pad), jnp.float32),
        in_specs=[pl.BlockSpec(memory_space=pltpu.MemorySpace.VMEM)] * 5,
        out_specs=pl.BlockSpec(memory_space=pltpu.MemorySpace.VMEM),
    )(xt, w1t, b1c, w2t, b2c)

    # Drop batch padding and return in the torch (N, O) layout.
    return out_t[:, :n].T


def init_params(key, n_features, n_hiddens, n_outputs):
    """Deterministic init mimicking torch.nn.Linear default (uniform +/- 1/sqrt(fan_in))."""
    k1, k2, k3, k4 = jax.random.split(key, 4)
    bound1 = 1.0 / math.sqrt(n_features)
    bound2 = 1.0 / math.sqrt(n_hiddens)
    # Stored as (in, out) so the reference computes x @ W (equivalent to torch's x @ W.T).
    w1 = jax.random.uniform(k1, (n_features, n_hiddens), jnp.float32, -bound1, bound1)
    b1 = jax.random.uniform(k2, (n_hiddens,), jnp.float32, -bound1, bound1)
    w2 = jax.random.uniform(k3, (n_hiddens, n_outputs), jnp.float32, -bound2, bound2)
    b2 = jax.random.uniform(k4, (n_outputs,), jnp.float32, -bound2, bound2)
    return w1, b1, w2, b2


if __name__ == "__main__":
    # Shapes implied by the reference script: x = cat(normal(2*ones(100,2)), normal(-2*ones(100,2)))
    # -> (200, 2) float32; Net(n_features=2, n_hiddens=10, n_outputs=2).
    N, F_IN, H, O = 200, 2, 10, 2

    key = jax.random.PRNGKey(0)
    kx0, kx1, kp = jax.random.split(key, 3)

    # Deterministic stand-in for torch.normal(+/-2 * ones, 1)
    x0 = 2.0 + jax.random.normal(kx0, (100, F_IN), jnp.float32)
    x1 = -2.0 + jax.random.normal(kx1, (100, F_IN), jnp.float32)
    x = jnp.concatenate([x0, x1], axis=0)

    w1, b1, w2, b2 = init_params(kp, F_IN, H, O)

    out = net_forward(x, w1, b1, w2, b2)
    jax.block_until_ready(out)

    # Cross-check against plain-JAX reference of the same forward pass.
    ref = jnp.maximum(x @ w1 + b1, 0.0) @ w2 + b2
    assert out.shape == (N, O)
    assert jnp.allclose(out, ref, atol=1e-5, rtol=1e-5)

    print("KERNEL_OK")
</pallas_src>

<mosaic_0001>
module attributes {stable_mosaic.version = 11 : i64} {
  func.func @_mlp_kernel(%arg0: memref<2x256xf32, #tpu.memory_space<vmem>>, %arg1: memref<10x2xf32, #tpu.memory_space<vmem>>, %arg2: memref<10x1xf32, #tpu.memory_space<vmem>>, %arg3: memref<2x10xf32, #tpu.memory_space<vmem>>, %arg4: memref<2x1xf32, #tpu.memory_space<vmem>>, %arg5: memref<2x256xf32, #tpu.memory_space<vmem>>) attributes {dimension_semantics = [], scalar_prefetch = 0 : i64, scratch_operands = 0 : i64, tpu.core_type = #tpu.core_type<tc>} {
    %c0 = arith.constant 0 : index
    %c0_0 = arith.constant 0 : index
    %0 = vector.load %arg2[%c0, %c0_0] : memref<10x1xf32, #tpu.memory_space<vmem>>, vector<10x1xf32>
    %c0_1 = arith.constant 0 : index
    %c0_2 = arith.constant 0 : index
    %1 = vector.load %arg1[%c0_1, %c0_2] : memref<10x2xf32, #tpu.memory_space<vmem>>, vector<10x1xf32>
    %c0_3 = arith.constant 0 : index
    %c0_4 = arith.constant 0 : index
    %2 = vector.load %arg0[%c0_3, %c0_4] : memref<2x256xf32, #tpu.memory_space<vmem>>, vector<1x256xf32>
    %3 = vector.broadcast %1 : vector<10x1xf32> to vector<10x256xf32>
    %4 = vector.broadcast %2 : vector<1x256xf32> to vector<10x256xf32>
    %5 = arith.mulf %3, %4 : vector<10x256xf32>
    %6 = vector.broadcast %0 : vector<10x1xf32> to vector<10x256xf32>
    %7 = arith.addf %6, %5 : vector<10x256xf32>
    %c0_5 = arith.constant 0 : index
    %c1 = arith.constant 1 : index
    %8 = vector.load %arg1[%c0_5, %c1] : memref<10x2xf32, #tpu.memory_space<vmem>>, vector<10x1xf32>
    %c1_6 = arith.constant 1 : index
    %c0_7 = arith.constant 0 : index
    %9 = vector.load %arg0[%c1_6, %c0_7] : memref<2x256xf32, #tpu.memory_space<vmem>>, vector<1x256xf32>
    %10 = vector.broadcast %8 : vector<10x1xf32> to vector<10x256xf32>
    %11 = vector.broadcast %9 : vector<1x256xf32> to vector<10x256xf32>
    %12 = arith.mulf %10, %11 : vector<10x256xf32>
    %13 = arith.addf %7, %12 : vector<10x256xf32>
    %cst = arith.constant 0.000000e+00 : f32
    %14 = vector.broadcast %cst : f32 to vector<10x256xf32>
    %15 = arith.maximumf %13, %14 : vector<10x256xf32>
    %c0_8 = arith.constant 0 : index
    %c0_9 = arith.constant 0 : index
    %16 = vector.load %arg4[%c0_8, %c0_9] : memref<2x1xf32, #tpu.memory_space<vmem>>, vector<2x1xf32>
    %c0_10 = arith.constant 0 : index
    %c0_11 = arith.constant 0 : index
    %17 = vector.load %arg3[%c0_10, %c0_11] : memref<2x10xf32, #tpu.memory_space<vmem>>, vector<2x1xf32>
    %18 = vector.extract_strided_slice %15 {offsets = [0, 0], sizes = [1, 256], strides = [1, 1]} : vector<10x256xf32> to vector<1x256xf32>
    %19 = vector.broadcast %17 : vector<2x1xf32> to vector<2x256xf32>
    %20 = vector.broadcast %18 : vector<1x256xf32> to vector<2x256xf32>
    %21 = arith.mulf %19, %20 : vector<2x256xf32>
    %22 = vector.broadcast %16 : vector<2x1xf32> to vector<2x256xf32>
    %23 = arith.addf %22, %21 : vector<2x256xf32>
    %c0_12 = arith.constant 0 : index
    %c1_13 = arith.constant 1 : index
    %24 = vector.load %arg3[%c0_12, %c1_13] : memref<2x10xf32, #tpu.memory_space<vmem>>, vector<2x1xf32>
    %25 = vector.extract_strided_slice %15 {offsets = [1, 0], sizes = [1, 256], strides = [1, 1]} : vector<10x256xf32> to vector<1x256xf32>
    %26 = vector.broadcast %24 : vector<2x1xf32> to vector<2x256xf32>
    %27 = vector.broadcast %25 : vector<1x256xf32> to vector<2x256xf32>
    %28 = arith.mulf %26, %27 : vector<2x256xf32>
    %29 = arith.addf %23, %28 : vector<2x256xf32>
    %c0_14 = arith.constant 0 : index
    %c2 = arith.constant 2 : index
    %30 = vector.load %arg3[%c0_14, %c2] : memref<2x10xf32, #tpu.memory_space<vmem>>, vector<2x1xf32>
    %31 = vector.extract_strided_slice %15 {offsets = [2, 0], sizes = [1, 256], strides = [1, 1]} : vector<10x256xf32> to vector<1x256xf32>
    %32 = vector.broadcast %30 : vector<2x1xf32> to vector<2x256xf32>
    %33 = vector.broadcast %31 : vector<1x256xf32> to vector<2x256xf32>
    %34 = arith.mulf %32, %33 : vector<2x256xf32>
    %35 = arith.addf %29, %34 : vector<2x256xf32>
    %c0_15 = arith.constant 0 : index
    %c3 = arith.constant 3 : index
    %36 = vector.load %arg3[%c0_15, %c3] : memref<2x10xf32, #tpu.memory_space<vmem>>, vector<2x1xf32>
    %37 = vector.extract_strided_slice %15 {offsets = [3, 0], sizes = [1, 256], strides = [1, 1]} : vector<10x256xf32> to vector<1x256xf32>
    %38 = vector.broadcast %36 : vector<2x1xf32> to vector<2x256xf32>
    %39 = vector.broadcast %37 : vector<1x256xf32> to vector<2x256xf32>
    %40 = arith.mulf %38, %39 : vector<2x256xf32>
    %41 = arith.addf %35, %40 : vector<2x256xf32>
    %c0_16 = arith.constant 0 : index
    %c4 = arith.constant 4 : index
    %42 = vector.load %arg3[%c0_16, %c4] : memref<2x10xf32, #tpu.memory_space<vmem>>, vector<2x1xf32>
    %43 = vector.extract_strided_slice %15 {offsets = [4, 0], sizes = [1, 256], strides = [1, 1]} : vector<10x256xf32> to vector<1x256xf32>
    %44 = vector.broadcast %42 : vector<2x1xf32> to vector<2x256xf32>
    %45 = vector.broadcast %43 : vector<1x256xf32> to vector<2x256xf32>
    %46 = arith.mulf %44, %45 : vector<2x256xf32>
    %47 = arith.addf %41, %46 : vector<2x256xf32>
    %c0_17 = arith.constant 0 : index
    %c5 = arith.constant 5 : index
    %48 = vector.load %arg3[%c0_17, %c5] : memref<2x10xf32, #tpu.memory_space<vmem>>, vector<2x1xf32>
    %49 = vector.extract_strided_slice %15 {offsets = [5, 0], sizes = [1, 256], strides = [1, 1]} : vector<10x256xf32> to vector<1x256xf32>
    %50 = vector.broadcast %48 : vector<2x1xf32> to vector<2x256xf32>
    %51 = vector.broadcast %49 : vector<1x256xf32> to vector<2x256xf32>
    %52 = arith.mulf %50, %51 : vector<2x256xf32>
    %53 = arith.addf %47, %52 : vector<2x256xf32>
    %c0_18 = arith.constant 0 : index
    %c6 = arith.constant 6 : index
    %54 = vector.load %arg3[%c0_18, %c6] : memref<2x10xf32, #tpu.memory_space<vmem>>, vector<2x1xf32>
    %55 = vector.extract_strided_slice %15 {offsets = [6, 0], sizes = [1, 256], strides = [1, 1]} : vector<10x256xf32> to vector<1x256xf32>
    %56 = vector.broadcast %54 : vector<2x1xf32> to vector<2x256xf32>
    %57 = vector.broadcast %55 : vector<1x256xf32> to vector<2x256xf32>
    %58 = arith.mulf %56, %57 : vector<2x256xf32>
    %59 = arith.addf %53, %58 : vector<2x256xf32>
    %c0_19 = arith.constant 0 : index
    %c7 = arith.constant 7 : index
    %60 = vector.load %arg3[%c0_19, %c7] : memref<2x10xf32, #tpu.memory_space<vmem>>, vector<2x1xf32>
    %61 = vector.extract_strided_slice %15 {offsets = [7, 0], sizes = [1, 256], strides = [1, 1]} : vector<10x256xf32> to vector<1x256xf32>
    %62 = vector.broadcast %60 : vector<2x1xf32> to vector<2x256xf32>
    %63 = vector.broadcast %61 : vector<1x256xf32> to vector<2x256xf32>
    %64 = arith.mulf %62, %63 : vector<2x256xf32>
    %65 = arith.addf %59, %64 : vector<2x256xf32>
    %c0_20 = arith.constant 0 : index
    %c8 = arith.constant 8 : index
    %66 = vector.load %arg3[%c0_20, %c8] : memref<2x10xf32, #tpu.memory_space<vmem>>, vector<2x1xf32>
    %67 = vector.extract_strided_slice %15 {offsets = [8, 0], sizes = [1, 256], strides = [1, 1]} : vector<10x256xf32> to vector<1x256xf32>
    %68 = vector.broadcast %66 : vector<2x1xf32> to vector<2x256xf32>
    %69 = vector.broadcast %67 : vector<1x256xf32> to vector<2x256xf32>
    %70 = arith.mulf %68, %69 : vector<2x256xf32>
    %71 = arith.addf %65, %70 : vector<2x256xf32>
    %c0_21 = arith.constant 0 : index
    %c9 = arith.constant 9 : index
    %72 = vector.load %arg3[%c0_21, %c9] : memref<2x10xf32, #tpu.memory_space<vmem>>, vector<2x1xf32>
    %73 = vector.extract_strided_slice %15 {offsets = [9, 0], sizes = [1, 256], strides = [1, 1]} : vector<10x256xf32> to vector<1x256xf32>
    %74 = vector.broadcast %72 : vector<2x1xf32> to vector<2x256xf32>
    %75 = vector.broadcast %73 : vector<1x256xf32> to vector<2x256xf32>
    %76 = arith.mulf %74, %75 : vector<2x256xf32>
    %77 = arith.addf %71, %76 : vector<2x256xf32>
    %c0_22 = arith.constant 0 : index
    %c0_23 = arith.constant 0 : index
    %78 = vector.load %arg5[%c0_22, %c0_23] : memref<2x256xf32, #tpu.memory_space<vmem>>, vector<2x256xf32>
    tpu.vector_store %arg5[%c0_22, %c0_23], %77 {strides = array<i32>} : memref<2x256xf32, #tpu.memory_space<vmem>>, vector<2x256xf32>,
    return
  }
}

</mosaic_0001>

<llo_original>
// kernel: tpu_custom_call.1
$region0: #{tpu_custom_call.1}
  #allocation0 [shape = 'u32[]', space=smem, size = 0x4, offset = 0x4, fixed_abs, tag = 'smem constant byte address 0x4 - core index']
  #allocation1 [shape = 'u32[144,128]{1,0:T(1,128)}', space=vmem, size = 0x12000, scoped, tag = 'internal scratch']
  %s0 = inlined_call_operand.vmem [shape: f32[2,256], index: 0, kind: input, shape index: {}]
  %s1 = inlined_call_operand.vmem [shape: f32[10,2], index: 1, kind: input, shape index: {}]
  %s2 = inlined_call_operand.vmem [shape: f32[10,1], index: 2, kind: input, shape index: {}]
  %s3 = inlined_call_operand.vmem [shape: f32[2,10], index: 3, kind: input, shape index: {}]
  %s4 = inlined_call_operand.vmem [shape: f32[2,1], index: 4, kind: input, shape index: {}]
  %s5 = inlined_call_operand.hbm [shape: f32[2,256], index: 5, kind: output, shape index: {}]
  %s6 = sld [smem:[#allocation0]]
  $region30: #{tpu_custom_call.1} parent=0
    _
  %s8 = ssub.s32 1, %s6
  %s9 = scalar_select 0, %s8, %s6
  $region1: #{tpu_custom_call.1} parent=0
    #allocation2 [shape = 'u8[2048]{0}', space=vmem, size = 0x800, scoped, tag = 'output window, operand 0, single buffered']
    #allocation3 [shape = 's32[1]{0}', space=sflag, size = 0x4, scoped, tag = 'scoped memory for tpu_custom_call.1']
    %10 = vsyncpa [#allocation3], 0
    // Predicated region
    $region2: #{tpu_custom_call.1} parent=1 // pred_check
      _
    $region3: #{tpu_custom_call.1} parent=1 // pred_check_branch
      %12 = sbr.rel (0) target = $region5
    $region4: #{tpu_custom_call.1} parent=1 // pred_region
      _
    $region5: #{tpu_custom_call.1} parent=1 // pred_fallthru
      _
    // Predicated region
    $region6: #{tpu_custom_call.1} parent=1 // pred_check
      _
    $region7: #{tpu_custom_call.1} parent=1 // pred_check_branch
      %14 = sbr.rel (0) target = $region9
    $region8: #{tpu_custom_call.1} parent=1 // pred_region
      _
    $region9: #{tpu_custom_call.1} parent=1 // pred_fallthru
      _
    // Predicated region
    $region10: #{tpu_custom_call.1} parent=1 // pred_check
      _
    $region11: #{tpu_custom_call.1} parent=1 // pred_check_branch
      %16 = sbr.rel (0) target = $region13
    $region12: #{tpu_custom_call.1} parent=1 // pred_region
      _
    $region13: #{tpu_custom_call.1} parent=1 // pred_fallthru
      _
    // Predicated region
    $region14: #{tpu_custom_call.1} parent=1 // pred_check
      _
    $region15: #{tpu_custom_call.1} parent=1 // pred_check_branch
      %18 = sbr.rel (0) target = $region17
    $region16: #{tpu_custom_call.1} parent=1 // pred_region
      _
    $region17: #{tpu_custom_call.1} parent=1 // pred_fallthru
      _
    // Predicated region
    $region18: #{tpu_custom_call.1} parent=1 // pred_check
      _
    $region19: #{tpu_custom_call.1} parent=1 // pred_check_branch
      %20 = sbr.rel (0) target = $region21
    $region20: #{tpu_custom_call.1} parent=1 // pred_region
      _
    $region21: #{tpu_custom_call.1} parent=1 // pred_fallthru
      _
    %v21 = vld [vmem:[%s2] sm:$0xff]
    %v22 = vld [vmem:[%s2 + $0x8] sm:$0x3]
    %v23 = vld [vmem:[%s1] sm:$0xff]
    %v24 = vld [vmem:[%s1 + $0x8] sm:$0x3]
    %v25 = vld [vmem:[%s0] ss:$2 sm:$0x3]
    %27 = vset.pattern.permute.xlu0 0
    %28 = vperm.xlu0 %27, %v23
    %v29 = vpop.permute.xlu0 %28
    %32 = vset.pattern.permute.xlu0 0
    %33 = vperm.xlu0 %32, %v24
    %v34 = vpop.permute.xlu0 %33
    %v37 = vlaneseq
    %v38 = vshrl.u32 %v37, 7
    %v39 = vsub.s32 0, %v38
    %v40 = vrot.slane %v25, %v39
    %v41 = vlaneseq
    %v42 = vshrl.u32 %v41, 7
    %v43 = vsub.s32 1, %v42
    %v44 = vrot.slane %v25, %v43
    %v47 = vmul.f32 %v29, %v40
    %v48 = vmul.f32 %v29, %v44
    %v49 = vmul.f32 %v34, %v40
    %v50 = vmul.f32 %v34, %v44
    %52 = vset.pattern.permute.xlu0 0
    %53 = vperm.xlu0 %52, %v21
    %v54 = vpop.permute.xlu0 %53
    %57 = vset.pattern.permute.xlu0 0
    %58 = vperm.xlu0 %57, %v22
    %v59 = vpop.permute.xlu0 %58
    %v61 = vadd.f32 %v54, %v47
    %v62 = vadd.f32 %v54, %v48
    %v63 = vadd.f32 %v59, %v49
    %v64 = vadd.f32 %v59, %v50
    %s65 = scalar_lea.vmem %s0, 1
    %v66 = vld [vmem:[%s65] ss:$2 sm:$0x3]
    %67 = vset.pattern.permute.xlu0 1
    %68 = vperm.xlu0 %67, %v23
    %v69 = vpop.permute.xlu0 %68
    %71 = vset.pattern.permute.xlu0 1
    %72 = vperm.xlu0 %71, %v24
    %v73 = vpop.permute.xlu0 %72
    %v76 = vlaneseq
    %v77 = vshrl.u32 %v76, 7
    %v78 = vsub.s32 0, %v77
    %v79 = vrot.slane %v66, %v78
    %v80 = vlaneseq
    %v81 = vshrl.u32 %v80, 7
    %v82 = vsub.s32 1, %v81
    %v83 = vrot.slane %v66, %v82
    %v86 = vmul.f32 %v69, %v79
    %v87 = vmul.f32 %v69, %v83
    %v88 = vmul.f32 %v73, %v79
    %v89 = vmul.f32 %v73, %v83
    %v90 = vadd.f32 %v61, %v86
    %v91 = vadd.f32 %v62, %v87
    %v92 = vadd.f32 %v63, %v88
    %v93 = vadd.f32 %v64, %v89
    %v94 = vmax.f32 %v90, 0.0
    %v95 = vmax.f32 %v91, 0.0
    %v96 = vmax.f32 %v92, 0.0
    %v97 = vmax.f32 %v93, 0.0
    %v98 = vld [vmem:[%s4] sm:$0x3]
    %v99 = vld [vmem:[%s3] sm:$0x3]
    %101 = vset.pattern.permute.xlu0 0
    %102 = vperm.xlu0 %101, %v99
    %v103 = vpop.permute.xlu0 %102
    %v105 = vlaneseq
    %v106 = vshrl.u32 %v105, 7
    %v107 = vsub.s32 0, %v106
    %v108 = vrot.slane %v94, %v107
    %v109 = vlaneseq
    %v110 = vshrl.u32 %v109, 7
    %v111 = vsub.s32 0, %v110
    %v112 = vrot.slane %v95, %v111
    %v113 = vmul.f32 %v103, %v108
    %v114 = vmul.f32 %v103, %v112
    %116 = vset.pattern.permute.xlu0 0
    %117 = vperm.xlu0 %116, %v98
    %v118 = vpop.permute.xlu0 %117
    %v120 = vadd.f32 %v118, %v113
    %v121 = vadd.f32 %v118, %v114
    %122 = vset.pattern.permute.xlu0 1
    %123 = vperm.xlu0 %122, %v99
    %v124 = vpop.permute.xlu0 %123
    %v126 = vlaneseq
    %v127 = vshrl.u32 %v126, 7
    %v128 = vsub.s32 1, %v127
    %v129 = vrot.slane %v94, %v128
    %v130 = vlaneseq
    %v131 = vshrl.u32 %v130, 7
    %v132 = vsub.s32 1, %v131
    %v133 = vrot.slane %v95, %v132
    %v134 = vmul.f32 %v124, %v129
    %v135 = vmul.f32 %v124, %v133
    %v136 = vadd.f32 %v120, %v134
    %v137 = vadd.f32 %v121, %v135
    %138 = vset.pattern.permute.xlu0 2
    %139 = vperm.xlu0 %138, %v99
    %v140 = vpop.permute.xlu0 %139
    %v142 = vlaneseq
    %v143 = vshrl.u32 %v142, 7
    %v144 = vsub.s32 2, %v143
    %v145 = vrot.slane %v94, %v144
    %v146 = vlaneseq
    %v147 = vshrl.u32 %v146, 7
    %v148 = vsub.s32 2, %v147
    %v149 = vrot.slane %v95, %v148
    %v150 = vmul.f32 %v140, %v145
    %v151 = vmul.f32 %v140, %v149
    %v152 = vadd.f32 %v136, %v150
    %v153 = vadd.f32 %v137, %v151
    %154 = vset.pattern.permute.xlu0 3
    %155 = vperm.xlu0 %154, %v99
    %v156 = vpop.permute.xlu0 %155
    %v158 = vlaneseq
    %v159 = vshrl.u32 %v158, 7
    %v160 = vsub.s32 3, %v159
    %v161 = vrot.slane %v94, %v160
    %v162 = vlaneseq
    %v163 = vshrl.u32 %v162, 7
    %v164 = vsub.s32 3, %v163
    %v165 = vrot.slane %v95, %v164
    %v166 = vmul.f32 %v156, %v161
    %v167 = vmul.f32 %v156, %v165
    %v168 = vadd.f32 %v152, %v166
    %v169 = vadd.f32 %v153, %v167
    %170 = vset.pattern.permute.xlu0 4
    %171 = vperm.xlu0 %170, %v99
    %v172 = vpop.permute.xlu0 %171
    %v174 = vlaneseq
    %v175 = vshrl.u32 %v174, 7
    %v176 = vsub.s32 4, %v175
    %v177 = vrot.slane %v94, %v176
    %v178 = vlaneseq
    %v179 = vshrl.u32 %v178, 7
    %v180 = vsub.s32 4, %v179
    %v181 = vrot.slane %v95, %v180
    %v182 = vmul.f32 %v172, %v177
    %v183 = vmul.f32 %v172, %v181
    %v184 = vadd.f32 %v168, %v182
    %v185 = vadd.f32 %v169, %v183
    %186 = vset.pattern.permute.xlu0 5
    %187 = vperm.xlu0 %186, %v99
    %v188 = vpop.permute.xlu0 %187
    %v190 = vlaneseq
    %v191 = vshrl.u32 %v190, 7
    %v192 = vsub.s32 5, %v191
    %v193 = vrot.slane %v94, %v192
    %v194 = vlaneseq
    %v195 = vshrl.u32 %v194, 7
    %v196 = vsub.s32 5, %v195
    %v197 = vrot.slane %v95, %v196
    %v198 = vmul.f32 %v188, %v193
    %v199 = vmul.f32 %v188, %v197
    %v200 = vadd.f32 %v184, %v198
    %v201 = vadd.f32 %v185, %v199
    %202 = vset.pattern.permute.xlu0 6
    %203 = vperm.xlu0 %202, %v99
    %v204 = vpop.permute.xlu0 %203
    %v206 = vlaneseq
    %v207 = vshrl.u32 %v206, 7
    %v208 = vsub.s32 6, %v207
    %v209 = vrot.slane %v94, %v208
    %v210 = vlaneseq
    %v211 = vshrl.u32 %v210, 7
    %v212 = vsub.s32 6, %v211
    %v213 = vrot.slane %v95, %v212
    %v214 = vmul.f32 %v204, %v209
    %v215 = vmul.f32 %v204, %v213
    %v216 = vadd.f32 %v200, %v214
    %v217 = vadd.f32 %v201, %v215
    %218 = vset.pattern.permute.xlu0 7
    %219 = vperm.xlu0 %218, %v99
    %v220 = vpop.permute.xlu0 %219
    %v222 = vlaneseq
    %v223 = vshrl.u32 %v222, 7
    %v224 = vsub.s32 7, %v223
    %v225 = vrot.slane %v94, %v224
    %v226 = vlaneseq
    %v227 = vshrl.u32 %v226, 7
    %v228 = vsub.s32 7, %v227
    %v229 = vrot.slane %v95, %v228
    %v230 = vmul.f32 %v220, %v225
    %v231 = vmul.f32 %v220, %v229
    %v232 = vadd.f32 %v216, %v230
    %v233 = vadd.f32 %v217, %v231
    %234 = vset.pattern.permute.xlu0 8
    %235 = vperm.xlu0 %234, %v99
    %v236 = vpop.permute.xlu0 %235
    %v238 = vlaneseq
    %v239 = vshrl.u32 %v238, 7
    %v240 = vsub.s32 0, %v239
    %v241 = vrot.slane %v96, %v240
    %v242 = vlaneseq
    %v243 = vshrl.u32 %v242, 7
    %v244 = vsub.s32 0, %v243
    %v245 = vrot.slane %v97, %v244
    %v246 = vmul.f32 %v236, %v241
    %v247 = vmul.f32 %v236, %v245
    %v248 = vadd.f32 %v232, %v246
    %v249 = vadd.f32 %v233, %v247
    %250 = vset.pattern.permute.xlu0 9
    %251 = vperm.xlu0 %250, %v99
    %v252 = vpop.permute.xlu0 %251
    %v254 = vlaneseq
    %v255 = vshrl.u32 %v254, 7
    %v256 = vsub.s32 1, %v255
    %v257 = vrot.slane %v96, %v256
    %v258 = vlaneseq
    %v259 = vshrl.u32 %v258, 7
    %v260 = vsub.s32 1, %v259
    %v261 = vrot.slane %v97, %v260
    %v262 = vmul.f32 %v252, %v257
    %v263 = vmul.f32 %v252, %v261
    %v264 = vadd.f32 %v248, %v262
    %v265 = vadd.f32 %v249, %v263
    %v268 = vcombine.low %v264, %v265
    %v270 = vunpack.c.l.s4 1983009808
    %v271 = vunpack.c.0.s8 %v270
    %v272 = vlaneseq
    %v273 = vshrl.u32 %v272, 7
    %v274 = vsub.s32 %v271, %v273
    %v275 = vrot.slane %v268, %v274
    %277 = vst [vmem:[#allocation2] sm:$0xf] %v275
    // Predicated region
    $region22: #{tpu_custom_call.1} parent=1 // pred_check
      _
    $region23: #{tpu_custom_call.1} parent=1 // pred_check_branch
      %279 = sbr.rel (0) target = $region25
    $region24: #{tpu_custom_call.1} parent=1 // pred_region
      %s281 = ssub.s32 64, 64
      %282 = vsyncadd [#allocation3], %s281
      %s284 = sshll.u32 [#allocation2], 4
      %s285 = int_to_ptr.vmem [resolvable:$true] %s284
      %287 = dma.vmem_to_hbm [thread:$0]  %s285, 64, %s5, [#allocation3]
    $region25: #{tpu_custom_call.1} parent=1 // pred_fallthru
      _
    // Predicated region
    $region26: #{tpu_custom_call.1} parent=1 // pred_check
      _
    $region27: #{tpu_custom_call.1} parent=1 // pred_check_branch
      %289 = sbr.rel (0) target = $region29
    $region28: #{tpu_custom_call.1} parent=1 // pred_region
      %290 = dma.done [#allocation3], 64
    $region29: #{tpu_custom_call.1} parent=1 // pred_fallthru
      _
    %291 = vsyncpa [#allocation3], 1

</llo_original>
